<compile_context>
chip_gen: v6e
topology: v6e:2x2x1
jax: 0.10.0
libtpu: 0.0.40
codegen_flags: <defaults>
</compile_context>

<pallas_src>
import functools

import jax
import jax.numpy as jnp
from jax import lax
from jax.experimental import pallas as pl
from jax.experimental.pallas import tpu as pltpu


def _round_up(x, m):
    return (x + m - 1) // m * m


def _ntxent_kernel(zi_row_ref, zj_row_ref, zi_col_ref, zj_col_ref,   # inputs
                   out_ref,                                          # output
                   zn_rows_ref, pos_ref, m_ref, l_ref,               # scratch
                   *, batch_size, padded_batch, block, temperature,
                   compute_dtype):
    t = block
    r = pl.program_id(0)
    c = pl.program_id(1)
    num_c = pl.num_programs(1)

    inv_temp = jnp.float32(1.0 / temperature)
    neg_big = jnp.float32(-1e30)

    def normalize(x):
        x = x.astype(jnp.float32)
        ssq = jnp.sum(x * x, axis=-1, keepdims=True)
        # max(||x||, 1e-8) clamp written as rsqrt(max(||x||^2, 1e-16)): the
        # transcendental runs on the EUP and the divide becomes a multiply.
        # TODO(synk): PyTorch CosineSimilarity clamps ||x||*||y|| (not each norm);
        # identical except for exactly-zero embeddings.
        return x * lax.rsqrt(jnp.maximum(ssq, jnp.float32(1e-16)))

    # ---- c == 0: (re)initialize the per-row-block state. --------------------
    @pl.when(c == 0)
    def _init():
        zi_n = normalize(zi_row_ref[...])                       # [T, D] f32
        zj_n = normalize(zj_row_ref[...])                       # [T, D] f32
        zn_rows_ref[...] = jnp.concatenate([zi_n, zj_n], axis=0).astype(compute_dtype)
        # positive pair cos(zi_b, zj_b)/T, shared by row b of both halves.
        pos_ref[...] = jnp.sum(zi_n * zj_n, axis=-1, keepdims=True) * inv_temp
        m_ref[...] = jnp.full(m_ref.shape, neg_big, jnp.float32)
        l_ref[...] = jnp.zeros(l_ref.shape, jnp.float32)

    # ---- every step: one [2T, T] tile vs the zi columns, one vs zj. ---------
    ci_n = normalize(zi_col_ref[...]).astype(compute_dtype)     # [T, D]
    cj_n = normalize(zj_col_ref[...]).astype(compute_dtype)     # [T, D]
    rows = zn_rows_ref[...]                                     # [2T, D]

    dims = (((1,), (1,)), ((), ()))   # contract feature dim of both operands
    s_i = lax.dot_general(rows, ci_n, dims,
                          preferred_element_type=jnp.float32) * inv_temp
    s_j = lax.dot_general(rows, cj_n, dims,
                          preferred_element_type=jnp.float32) * inv_temp

    row_ids = lax.broadcasted_iota(jnp.int32, (2 * t, 1), 0)
    col_ids = lax.broadcasted_iota(jnp.int32, (1, t), 1)

    # Exclude only the self-similarity diagonal of the full [N, N] matrix (it
    # only appears when r == c); the positive pairs stay inside the logits.
    on_diag_block = r == c
    s_i = jnp.where((row_ids == col_ids) & on_diag_block, neg_big, s_i)
    s_j = jnp.where((row_ids == (col_ids + t)) & on_diag_block, neg_big, s_j)

    if padded_batch != batch_size:        # static: mask zero-padded columns
        pad_col = (col_ids + c * t) >= batch_size
        s_i = jnp.where(pad_col, neg_big, s_i)
        s_j = jnp.where(pad_col, neg_big, s_j)

    # Online logsumexp update (mask already applied to max AND sum).
    m_prev = m_ref[...]
    m_cur = jnp.maximum(jnp.max(s_i, axis=-1, keepdims=True),
                        jnp.max(s_j, axis=-1, keepdims=True))
    m_new = jnp.maximum(m_prev, m_cur)
    alpha = jnp.exp(m_prev - m_new)
    p_sum = (jnp.sum(jnp.exp(s_i - m_new), axis=-1, keepdims=True)
             + jnp.sum(jnp.exp(s_j - m_new), axis=-1, keepdims=True))
    l_ref[...] = alpha * l_ref[...] + p_sum
    m_ref[...] = m_new

    # ---- last column step: write this row block's partial loss sum. ---------
    @pl.when(c == num_c - 1)
    def _finalize():
        lse = m_ref[...] + jnp.log(l_ref[...])                  # [2T, 1]
        pos = pos_ref[...]                                      # [T, 1]
        per_pair = (lse[0:t, :] - pos) + (lse[t:2 * t, :] - pos)
        if padded_batch != batch_size:    # static: drop zero-padded rows
            rid = lax.broadcasted_iota(jnp.int32, (t, 1), 0)
            per_pair = jnp.where((rid + r * t) < batch_size, per_pair, 0.0)
        out_ref[...] = jnp.reshape(jnp.sum(per_pair), (1, 1, 1))


def contrastive_loss(zi, zj, temperature=0.5, *, block=None,
                     compute_dtype=jnp.bfloat16):
    """Pallas TPU implementation of ContrastiveLoss.forward(zi, zj)."""
    assert zi.shape == zj.shape and zi.ndim == 2
    b, d = zi.shape
    n = 2 * b

    # Lane-align the feature axis; zero padding changes neither norms nor dots.
    d_pad = _round_up(d, 128)
    # Row/col tile (sublane axis). 256 is MXU-friendly on v6e/v7x; pass block=128
    # on v5e. Small batches collapse to a single tile.
    if block is None:
        block = 256 if b > 256 else _round_up(b, 8)
    t = block
    assert t % 8 == 0, "tile size must be a multiple of 8 sublanes"
    b_pad = _round_up(b, t)

    def pad(x):
        x = x.astype(jnp.float32)
        return jnp.pad(x, ((0, b_pad - b), (0, d_pad - d)))

    zi_p, zj_p = pad(zi), pad(zj)
    num_r = num_c = b_pad // t

    kernel = functools.partial(
        _ntxent_kernel, batch_size=b, padded_batch=b_pad, block=t,
        temperature=float(temperature), compute_dtype=compute_dtype)

    row_spec = pl.BlockSpec((t, d_pad), lambda r, c: (r, 0))
    col_spec = pl.BlockSpec((t, d_pad), lambda r, c: (c, 0))
    out_spec = pl.BlockSpec((1, 1, 1), lambda r, c: (r, 0, 0))

    itemsize = jnp.dtype(compute_dtype).itemsize
    vmem_est = (4 * 2 * t * d_pad * 4          # 4 double-buffered f32 input tiles
                + 2 * t * d_pad * itemsize     # cached normalized row tiles
                + 8 * 2 * t * max(t, 128) * 4  # sim / softmax temporaries headroom
                + 8 * 2 * t * 128 * 4)         # lane-padded per-row accumulators
    vmem_limit = int(min(64 * 2 ** 20, max(32 * 2 ** 20, 2 * vmem_est)))

    partials = pl.pallas_call(
        kernel,
        out_shape=jax.ShapeDtypeStruct((num_r, 1, 1), jnp.float32),
        grid_spec=pltpu.PrefetchScalarGridSpec(
            num_scalar_prefetch=0,
            grid=(num_r, num_c),
            in_specs=[row_spec, row_spec, col_spec, col_spec],
            out_specs=out_spec,
            scratch_shapes=[
                pltpu.VMEM((2 * t, d_pad), compute_dtype),  # normalized rows (zi; zj)
                pltpu.VMEM((t, 1), jnp.float32),            # positive-pair term
                pltpu.VMEM((2 * t, 1), jnp.float32),        # running max
                pltpu.VMEM((2 * t, 1), jnp.float32),        # running sum
            ]),
        compiler_params=pltpu.CompilerParams(
            dimension_semantics=("parallel", "arbitrary"),
            vmem_limit_bytes=vmem_limit),
    )(zi_p, zj_p, zi_p, zj_p)

    return jnp.sum(partials) / n


def _reference_loss(zi, zj, temperature=0.5):
    # Pure-JAX f32 reference of the PyTorch forward.
    b = zi.shape[0]
    n = 2 * b
    z = jnp.concatenate([zi, zj], axis=0).astype(jnp.float32)
    zn = z / jnp.maximum(jnp.linalg.norm(z, axis=-1, keepdims=True), 1e-8)
    sim = (zn @ zn.T) / temperature
    idx = jnp.arange(n)
    pos = sim[idx, (idx + b) % n]
    sim_no_diag = jnp.where(jnp.eye(n, dtype=bool), -jnp.inf, sim)
    lse = jax.scipy.special.logsumexp(sim_no_diag, axis=-1)
    return jnp.sum(lse - pos) / n


if __name__ == "__main__":
    key = jax.random.PRNGKey(0)

    # Shapes implied by the module forward: zi, zj are [batch, hidden].
    batch, hidden = 8, 32
    ki, kj = jax.random.split(key)
    zi = jax.random.normal(ki, (batch, hidden), dtype=jnp.float32)
    zj = jax.random.normal(kj, (batch, hidden), dtype=jnp.float32)

    ref = jax.block_until_ready(_reference_loss(zi, zj, 0.5))

    # Default path (bf16 MXU matmul, f32 softmax math).
    loss = jax.block_until_ready(contrastive_loss(zi, zj, 0.5))
    assert jnp.allclose(loss, ref, rtol=1e-2, atol=1e-2), (loss, ref)

    # f32 path: tight algorithmic check of the online-logsumexp / masking.
    loss32 = jax.block_until_ready(
        contrastive_loss(zi, zj, 0.5, compute_dtype=jnp.float32))
    assert jnp.allclose(loss32, ref, rtol=1e-4, atol=1e-4), (loss32, ref)

    # Multi-tile path with batch/feature padding (forces a 3x3 grid).
    batch2, hidden2 = 20, 48
    k2i, k2j = jax.random.split(jax.random.PRNGKey(1))
    zi2 = jax.random.normal(k2i, (batch2, hidden2), dtype=jnp.float32)
    zj2 = jax.random.normal(k2j, (batch2, hidden2), dtype=jnp.float32)
    ref2 = jax.block_until_ready(_reference_loss(zi2, zj2, 0.5))
    loss2 = jax.block_until_ready(
        contrastive_loss(zi2, zj2, 0.5, block=8, compute_dtype=jnp.float32))
    assert jnp.allclose(loss2, ref2, rtol=1e-4, atol=1e-4), (loss2, ref2)

    print("KERNEL_OK")
</pallas_src>

<mosaic_0001>
module attributes {stable_mosaic.version = 11 : i64} {
  func.func @_ntxent_kernel(%arg0: i32, %arg1: i32, %arg2: memref<8x128xf32, #tpu.memory_space<vmem>>, %arg3: memref<8x128xf32, #tpu.memory_space<vmem>>, %arg4: memref<8x128xf32, #tpu.memory_space<vmem>>, %arg5: memref<8x128xf32, #tpu.memory_space<vmem>>, %arg6: memref<1x1x1xf32, #tpu.memory_space<vmem>>, %arg7: memref<16x128xbf16, #tpu.memory_space<vmem>>, %arg8: memref<8x1xf32, #tpu.memory_space<vmem>>, %arg9: memref<16x1xf32, #tpu.memory_space<vmem>>, %arg10: memref<16x1xf32, #tpu.memory_space<vmem>>) attributes {dimension_semantics = [#tpu.dimension_semantics<parallel>, #tpu.dimension_semantics<arbitrary>], iteration_bounds = array<i64: 1, 1>, scalar_prefetch = 0 : i64, scratch_operands = 4 : i64, tpu.core_type = #tpu.core_type<tc>, window_params = [{transform_indices = @transform_0, window_bounds = array<i64: 8, 128>}, {transform_indices = @transform_1, window_bounds = array<i64: 8, 128>}, {transform_indices = @transform_2, window_bounds = array<i64: 8, 128>}, {transform_indices = @transform_3, window_bounds = array<i64: 8, 128>}, {transform_indices = @transform_4, window_bounds = array<i64: 1, 1, 1>}]} {
    %c0_i32 = arith.constant 0 : i32
    %0 = arith.cmpi eq, %arg1, %c0_i32 : i32
    %1 = arith.extui %0 : i1 to i32
    %cst = arith.constant 2.000000e+00 : f32
    %cst_0 = arith.constant -1.000000e+30 : f32
    %c0_i32_1 = arith.constant 0 : i32
    %2 = arith.cmpi ne, %1, %c0_i32_1 : i32
    scf.if %2 {
      %c0_31 = arith.constant 0 : index
      %c0_32 = arith.constant 0 : index
      %77 = vector.load %arg2[%c0_31, %c0_32] : memref<8x128xf32, #tpu.memory_space<vmem>>, vector<8x128xf32>
      %78 = arith.mulf %77, %77 : vector<8x128xf32>
      %cst_33 = arith.constant dense<0.000000e+00> : vector<8xf32>
      %79 = vector.multi_reduction <add>, %78, %cst_33 [1] : vector<8x128xf32> to vector<8xf32>
      %80 = vector.shape_cast %79 : vector<8xf32> to vector<8x1xf32>
      %cst_34 = arith.constant 1.000000e-16 : f32
      %81 = vector.broadcast %cst_34 : f32 to vector<8x1xf32>
      %82 = arith.maximumf %80, %81 : vector<8x1xf32>
      %83 = math.rsqrt %82 : vector<8x1xf32>
      %84 = vector.broadcast %83 : vector<8x1xf32> to vector<8x128xf32>
      %85 = arith.mulf %77, %84 : vector<8x128xf32>
      %c0_35 = arith.constant 0 : index
      %c0_36 = arith.constant 0 : index
      %86 = vector.load %arg3[%c0_35, %c0_36] : memref<8x128xf32, #tpu.memory_space<vmem>>, vector<8x128xf32>
      %87 = arith.mulf %86, %86 : vector<8x128xf32>
      %cst_37 = arith.constant dense<0.000000e+00> : vector<8xf32>
      %88 = vector.multi_reduction <add>, %87, %cst_37 [1] : vector<8x128xf32> to vector<8xf32>
      %89 = vector.shape_cast %88 : vector<8xf32> to vector<8x1xf32>
      %cst_38 = arith.constant 1.000000e-16 : f32
      %90 = vector.broadcast %cst_38 : f32 to vector<8x1xf32>
      %91 = arith.maximumf %89, %90 : vector<8x1xf32>
      %92 = math.rsqrt %91 : vector<8x1xf32>
      %93 = vector.broadcast %92 : vector<8x1xf32> to vector<8x128xf32>
      %94 = arith.mulf %86, %93 : vector<8x128xf32>
      %95 = tpu.concatenate %85, %94 in 0 : vector<8x128xf32>, vector<8x128xf32> -> vector<16x128xf32>
      %96 = arith.truncf %95 : vector<16x128xf32> to vector<16x128xbf16>
      %c0_39 = arith.constant 0 : index
      %c0_40 = arith.constant 0 : index
      %97 = vector.load %arg7[%c0_39, %c0_40] : memref<16x128xbf16, #tpu.memory_space<vmem>>, vector<16x128xbf16>
      tpu.vector_store %arg7[%c0_39, %c0_40], %96 {strides = array<i32>} : memref<16x128xbf16, #tpu.memory_space<vmem>>, vector<16x128xbf16>,
      %98 = arith.mulf %85, %94 : vector<8x128xf32>
      %cst_41 = arith.constant dense<0.000000e+00> : vector<8xf32>
      %99 = vector.multi_reduction <add>, %98, %cst_41 [1] : vector<8x128xf32> to vector<8xf32>
      %100 = vector.shape_cast %99 : vector<8xf32> to vector<8x1xf32>
      %101 = vector.broadcast %cst : f32 to vector<8x1xf32>
      %102 = arith.mulf %100, %101 : vector<8x1xf32>
      %c0_42 = arith.constant 0 : index
      %c0_43 = arith.constant 0 : index
      %103 = vector.load %arg8[%c0_42, %c0_43] : memref<8x1xf32, #tpu.memory_space<vmem>>, vector<8x1xf32>
      tpu.vector_store %arg8[%c0_42, %c0_43], %102 {strides = array<i32>} : memref<8x1xf32, #tpu.memory_space<vmem>>, vector<8x1xf32>,
      %104 = vector.broadcast %cst_0 : f32 to vector<16x1xf32>
      %c0_44 = arith.constant 0 : index
      %c0_45 = arith.constant 0 : index
      %105 = vector.load %arg9[%c0_44, %c0_45] : memref<16x1xf32, #tpu.memory_space<vmem>>, vector<16x1xf32>
      tpu.vector_store %arg9[%c0_44, %c0_45], %104 {strides = array<i32>} : memref<16x1xf32, #tpu.memory_space<vmem>>, vector<16x1xf32>,
      %cst_46 = arith.constant 0.000000e+00 : f32
      %106 = vector.broadcast %cst_46 : f32 to vector<16x1xf32>
      %c0_47 = arith.constant 0 : index
      %c0_48 = arith.constant 0 : index
      %107 = vector.load %arg10[%c0_47, %c0_48] : memref<16x1xf32, #tpu.memory_space<vmem>>, vector<16x1xf32>
      tpu.vector_store %arg10[%c0_47, %c0_48], %106 {strides = array<i32>} : memref<16x1xf32, #tpu.memory_space<vmem>>, vector<16x1xf32>,
    } else {
    }
    %c0 = arith.constant 0 : index
    %c0_2 = arith.constant 0 : index
    %3 = vector.load %arg4[%c0, %c0_2] : memref<8x128xf32, #tpu.memory_space<vmem>>, vector<8x128xf32>
    %4 = arith.mulf %3, %3 : vector<8x128xf32>
    %cst_3 = arith.constant dense<0.000000e+00> : vector<8xf32>
    %5 = vector.multi_reduction <add>, %4, %cst_3 [1] : vector<8x128xf32> to vector<8xf32>
    %6 = vector.shape_cast %5 : vector<8xf32> to vector<8x1xf32>
    %cst_4 = arith.constant 1.000000e-16 : f32
    %7 = vector.broadcast %cst_4 : f32 to vector<8x1xf32>
    %8 = arith.maximumf %6, %7 : vector<8x1xf32>
    %9 = math.rsqrt %8 : vector<8x1xf32>
    %10 = vector.broadcast %9 : vector<8x1xf32> to vector<8x128xf32>
    %11 = arith.mulf %3, %10 : vector<8x128xf32>
    %12 = arith.truncf %11 : vector<8x128xf32> to vector<8x128xbf16>
    %c0_5 = arith.constant 0 : index
    %c0_6 = arith.constant 0 : index
    %13 = vector.load %arg5[%c0_5, %c0_6] : memref<8x128xf32, #tpu.memory_space<vmem>>, vector<8x128xf32>
    %14 = arith.mulf %13, %13 : vector<8x128xf32>
    %cst_7 = arith.constant dense<0.000000e+00> : vector<8xf32>
    %15 = vector.multi_reduction <add>, %14, %cst_7 [1] : vector<8x128xf32> to vector<8xf32>
    %16 = vector.shape_cast %15 : vector<8xf32> to vector<8x1xf32>
    %cst_8 = arith.constant 1.000000e-16 : f32
    %17 = vector.broadcast %cst_8 : f32 to vector<8x1xf32>
    %18 = arith.maximumf %16, %17 : vector<8x1xf32>
    %19 = math.rsqrt %18 : vector<8x1xf32>
    %20 = vector.broadcast %19 : vector<8x1xf32> to vector<8x128xf32>
    %21 = arith.mulf %13, %20 : vector<8x128xf32>
    %22 = arith.truncf %21 : vector<8x128xf32> to vector<8x128xbf16>
    %c0_9 = arith.constant 0 : index
    %c0_10 = arith.constant 0 : index
    %23 = vector.load %arg7[%c0_9, %c0_10] : memref<16x128xbf16, #tpu.memory_space<vmem>>, vector<16x128xbf16>
    %cst_11 = arith.constant dense<0.000000e+00> : vector<16x8xf32>
    %24 = tpu.matmul %23, %12, %cst_11 {dimension_numbers = #tpu.dot_dimension_numbers<[1], [1], [0], [0], [0, 0, 1, 0], [], []>} : vector<16x128xbf16>, vector<8x128xbf16>, vector<16x8xf32> -> vector<16x8xf32>
    %cst_12 = arith.constant 2.000000e+00 : f32
    %25 = vector.broadcast %cst_12 : f32 to vector<16x8xf32>
    %26 = arith.mulf %24, %25 : vector<16x8xf32>
    %cst_13 = arith.constant dense<0.000000e+00> : vector<16x8xf32>
    %27 = tpu.matmul %23, %22, %cst_13 {dimension_numbers = #tpu.dot_dimension_numbers<[1], [1], [0], [0], [0, 0, 1, 0], [], []>} : vector<16x128xbf16>, vector<8x128xbf16>, vector<16x8xf32> -> vector<16x8xf32>
    %cst_14 = arith.constant 2.000000e+00 : f32
    %28 = vector.broadcast %cst_14 : f32 to vector<16x8xf32>
    %29 = arith.mulf %27, %28 : vector<16x8xf32>
    %30 = tpu.iota {dimensions = array<i32: 0>} : vector<16x1xi32>
    %31 = tpu.iota {dimensions = array<i32: 1>} : vector<1x8xi32>
    %32 = arith.cmpi eq, %arg0, %arg1 : i32
    %33 = vector.broadcast %30 : vector<16x1xi32> to vector<16x8xi32>
    %34 = vector.broadcast %31 : vector<1x8xi32> to vector<16x8xi32>
    %35 = arith.cmpi eq, %33, %34 : vector<16x8xi32>
    %36 = vector.broadcast %32 : i1 to vector<16x8xi1>
    %37 = arith.andi %35, %36 : vector<16x8xi1>
    %cst_15 = arith.constant -1.000000e+30 : f32
    %38 = vector.broadcast %cst_15 : f32 to vector<16x8xf32>
    %39 = arith.select %37, %38, %26 : vector<16x8xi1>, vector<16x8xf32>
    %c8_i32 = arith.constant 8 : i32
    %40 = vector.broadcast %c8_i32 : i32 to vector<1x8xi32>
    %41 = arith.addi %31, %40 : vector<1x8xi32>
    %42 = vector.broadcast %30 : vector<16x1xi32> to vector<16x8xi32>
    %43 = vector.broadcast %41 : vector<1x8xi32> to vector<16x8xi32>
    %44 = arith.cmpi eq, %42, %43 : vector<16x8xi32>
    %45 = vector.broadcast %32 : i1 to vector<16x8xi1>
    %46 = arith.andi %44, %45 : vector<16x8xi1>
    %cst_16 = arith.constant -1.000000e+30 : f32
    %47 = vector.broadcast %cst_16 : f32 to vector<16x8xf32>
    %48 = arith.select %46, %47, %29 : vector<16x8xi1>, vector<16x8xf32>
    %c0_17 = arith.constant 0 : index
    %c0_18 = arith.constant 0 : index
    %49 = vector.load %arg9[%c0_17, %c0_18] : memref<16x1xf32, #tpu.memory_space<vmem>>, vector<16x1xf32>
    %cst_19 = arith.constant dense<0xFF800000> : vector<16xf32>
    %50 = vector.multi_reduction <maximumf>, %39, %cst_19 [1] : vector<16x8xf32> to vector<16xf32>
    %51 = vector.shape_cast %50 : vector<16xf32> to vector<16x1xf32>
    %cst_20 = arith.constant dense<0xFF800000> : vector<16xf32>
    %52 = vector.multi_reduction <maximumf>, %48, %cst_20 [1] : vector<16x8xf32> to vector<16xf32>
    %53 = vector.shape_cast %52 : vector<16xf32> to vector<16x1xf32>
    %54 = arith.maximumf %51, %53 : vector<16x1xf32>
    %55 = arith.maximumf %49, %54 : vector<16x1xf32>
    %56 = arith.subf %49, %55 : vector<16x1xf32>
    %57 = math.exp %56 : vector<16x1xf32>
    %58 = vector.broadcast %55 : vector<16x1xf32> to vector<16x8xf32>
    %59 = arith.subf %39, %58 : vector<16x8xf32>
    %60 = math.exp %59 : vector<16x8xf32>
    %cst_21 = arith.constant dense<0.000000e+00> : vector<16xf32>
    %61 = vector.multi_reduction <add>, %60, %cst_21 [1] : vector<16x8xf32> to vector<16xf32>
    %62 = vector.shape_cast %61 : vector<16xf32> to vector<16x1xf32>
    %63 = vector.broadcast %55 : vector<16x1xf32> to vector<16x8xf32>
    %64 = arith.subf %48, %63 : vector<16x8xf32>
    %65 = math.exp %64 : vector<16x8xf32>
    %cst_22 = arith.constant dense<0.000000e+00> : vector<16xf32>
    %66 = vector.multi_reduction <add>, %65, %cst_22 [1] : vector<16x8xf32> to vector<16xf32>
    %67 = vector.shape_cast %66 : vector<16xf32> to vector<16x1xf32>
    %68 = arith.addf %62, %67 : vector<16x1xf32>
    %c0_23 = arith.constant 0 : index
    %c0_24 = arith.constant 0 : index
    %69 = vector.load %arg10[%c0_23, %c0_24] : memref<16x1xf32, #tpu.memory_space<vmem>>, vector<16x1xf32>
    %70 = arith.mulf %57, %69 : vector<16x1xf32>
    %71 = arith.addf %70, %68 : vector<16x1xf32>
    %c0_25 = arith.constant 0 : index
    %c0_26 = arith.constant 0 : index
    %72 = vector.load %arg10[%c0_25, %c0_26] : memref<16x1xf32, #tpu.memory_space<vmem>>, vector<16x1xf32>
    tpu.vector_store %arg10[%c0_25, %c0_26], %71 {strides = array<i32>} : memref<16x1xf32, #tpu.memory_space<vmem>>, vector<16x1xf32>,
    %c0_27 = arith.constant 0 : index
    %c0_28 = arith.constant 0 : index
    %73 = vector.load %arg9[%c0_27, %c0_28] : memref<16x1xf32, #tpu.memory_space<vmem>>, vector<16x1xf32>
    tpu.vector_store %arg9[%c0_27, %c0_28], %55 {strides = array<i32>} : memref<16x1xf32, #tpu.memory_space<vmem>>, vector<16x1xf32>,
    %c0_i32_29 = arith.constant 0 : i32
    %74 = arith.cmpi eq, %arg1, %c0_i32_29 : i32
    %75 = arith.extui %74 : i1 to i32
    %c0_i32_30 = arith.constant 0 : i32
    %76 = arith.cmpi ne, %75, %c0_i32_30 : i32
    scf.if %76 {
      %c0_31 = arith.constant 0 : index
      %c0_32 = arith.constant 0 : index
      %77 = vector.load %arg9[%c0_31, %c0_32] : memref<16x1xf32, #tpu.memory_space<vmem>>, vector<16x1xf32>
      %c0_33 = arith.constant 0 : index
      %c0_34 = arith.constant 0 : index
      %78 = vector.load %arg10[%c0_33, %c0_34] : memref<16x1xf32, #tpu.memory_space<vmem>>, vector<16x1xf32>
      %79 = math.log %78 : vector<16x1xf32>
      %80 = arith.addf %77, %79 : vector<16x1xf32>
      %c0_35 = arith.constant 0 : index
      %c0_36 = arith.constant 0 : index
      %81 = vector.load %arg8[%c0_35, %c0_36] : memref<8x1xf32, #tpu.memory_space<vmem>>, vector<8x1xf32>
      %82 = vector.extract_strided_slice %80 {offsets = [0, 0], sizes = [8, 1], strides = [1, 1]} : vector<16x1xf32> to vector<8x1xf32>
      %83 = arith.subf %82, %81 : vector<8x1xf32>
      %84 = vector.extract_strided_slice %80 {offsets = [8, 0], sizes = [8, 1], strides = [1, 1]} : vector<16x1xf32> to vector<8x1xf32>
      %85 = arith.subf %84, %81 : vector<8x1xf32>
      %86 = arith.addf %83, %85 : vector<8x1xf32>
      %87 = vector.shape_cast %86 : vector<8x1xf32> to vector<1x8x1xf32>
      %cst_37 = arith.constant dense<0.000000e+00> : vector<1xf32>
      %88 = vector.multi_reduction <add>, %87, %cst_37 [1, 2] : vector<1x8x1xf32> to vector<1xf32>
      %89 = vector.shape_cast %88 : vector<1xf32> to vector<1x1x1xf32>
      %90 = vector.extract %89[0, 0, 0] : f32 from vector<1x1x1xf32>
      %91 = vector.broadcast %90 : f32 to vector<1x1x1xf32>
      %c0_38 = arith.constant 0 : index
      %c0_39 = arith.constant 0 : index
      %c0_40 = arith.constant 0 : index
      %92 = vector.load %arg6[%c0_38, %c0_39, %c0_40] : memref<1x1x1xf32, #tpu.memory_space<vmem>>, vector<1x1x1xf32>
      tpu.vector_store %arg6[%c0_38, %c0_39, %c0_40], %91 {strides = array<i32>} : memref<1x1x1xf32, #tpu.memory_space<vmem>>, vector<1x1x1xf32>,
    } else {
    }
    return
  }
  func.func @transform_0(%arg0: i32, %arg1: i32) -> (i32, i32) {
    %c0_i32 = arith.constant 0 : i32
    %c0_i32_0 = arith.constant 0 : i32
    return %arg0, %c0_i32 : i32, i32
  }
  func.func @transform_1(%arg0: i32, %arg1: i32) -> (i32, i32) {
    %c0_i32 = arith.constant 0 : i32
    %c0_i32_0 = arith.constant 0 : i32
    return %arg0, %c0_i32 : i32, i32
  }
  func.func @transform_2(%arg0: i32, %arg1: i32) -> (i32, i32) {
    %c0_i32 = arith.constant 0 : i32
    %c0_i32_0 = arith.constant 0 : i32
    return %arg1, %c0_i32 : i32, i32
  }
  func.func @transform_3(%arg0: i32, %arg1: i32) -> (i32, i32) {
    %c0_i32 = arith.constant 0 : i32
    %c0_i32_0 = arith.constant 0 : i32
    return %arg1, %c0_i32 : i32, i32
  }
  func.func @transform_4(%arg0: i32, %arg1: i32) -> (i32, i32, i32) {
    %c0_i32 = arith.constant 0 : i32
    %c0_i32_0 = arith.constant 0 : i32
    %c0_i32_1 = arith.constant 0 : i32
    return %arg0, %c0_i32, %c0_i32_0 : i32, i32, i32
  }
}

</mosaic_0001>

<llo_original>
// kernel: tpu_custom_call.1
$region0: #{tpu_custom_call.1}
  #allocation0 [shape = 'u32[]', space=smem, size = 0x4, offset = 0x4, fixed_abs, tag = 'smem constant byte address 0x4 - core index']
  #allocation1 [shape = 'u32[144,128]{1,0:T(1,128)}', space=vmem, size = 0x12000, scoped, tag = 'internal scratch']
  #allocation2 [shape = 'bf16[16,128]{1,0:T(8,128)(2,1)}', space=vmem, size = 0x1000, scoped, tag = 'scratch operand']
  #allocation3 [shape = 'f32[8,1]{1,0:T(8,128)}', space=vmem, size = 0x1000, scoped, tag = 'scratch operand']
  #allocation4 [shape = 'f32[16,1]{1,0:T(8,128)}', space=vmem, size = 0x2000, scoped, tag = 'scratch operand']
  #allocation5 [shape = 'f32[16,1]{1,0:T(8,128)}', space=vmem, size = 0x2000, scoped, tag = 'scratch operand']
  %s0 = inlined_call_operand.hbm [shape: f32[8,128], index: 0, kind: input, shape index: {}]
  %s1 = inlined_call_operand.hbm [shape: f32[8,128], index: 1, kind: input, shape index: {}]
  %s2 = inlined_call_operand.hbm [shape: f32[8,128], index: 2, kind: input, shape index: {}]
  %s3 = inlined_call_operand.hbm [shape: f32[8,128], index: 3, kind: input, shape index: {}]
  %s4 = inlined_call_operand.hbm [shape: f32[1,1,1], index: 4, kind: output, shape index: {}]
  %s5 = sld [smem:[#allocation0]]
  $region50: #{tpu_custom_call.1} parent=0
    _
  %s7 = ssub.s32 1, %s5
  %s8 = scalar_select 0, %s7, %s5
  $region1: #{tpu_custom_call.1} parent=0
    #allocation6 [shape = 'u8[4096]{0}', space=vmem, size = 0x1000, scoped, tag = 'input window, operand 0, single buffered']
    #allocation7 [shape = 's32[1]{0}', space=sflag, size = 0x4, scoped, tag = 'scoped memory for tpu_custom_call.1']
    #allocation8 [shape = 's32[1]{0}', space=sflag, size = 0x4, scoped, tag = 'scoped memory for tpu_custom_call.1']
    #allocation9 [shape = 'u8[4096]{0}', space=vmem, size = 0x1000, scoped, tag = 'input window, operand 1, single buffered']
    #allocation10 [shape = 's32[1]{0}', space=sflag, size = 0x4, scoped, tag = 'scoped memory for tpu_custom_call.1']
    #allocation11 [shape = 'u8[4096]{0}', space=vmem, size = 0x1000, scoped, tag = 'input window, operand 2, single buffered']
    #allocation12 [shape = 'u8[4096]{0}', space=vmem, size = 0x1000, scoped, tag = 'input window, operand 3, single buffered']
    #allocation13 [shape = 's32[1]{0}', space=sflag, size = 0x4, scoped, tag = 'scoped memory for tpu_custom_call.1']
    #allocation14 [shape = 'u8[512]{0}', space=vmem, size = 0x400, scoped, tag = 'output window, operand 0, single buffered']
    %9 = vsyncpa [#allocation7], 0
    %10 = vsyncpa [#allocation10], 0
    %11 = vsyncpa [#allocation13], 0
    %12 = vsyncpa [#allocation8], 0
    // Predicated region
    $region2: #{tpu_custom_call.1} parent=1 // pred_check
      _
    $region3: #{tpu_custom_call.1} parent=1 // pred_check_branch
      %14 = sbr.rel (0) target = $region5
    $region4: #{tpu_custom_call.1} parent=1 // pred_region
      %s16 = ssub.s32 128, 128
      %17 = vsyncadd [#allocation7], %s16
      %s19 = sshll.u32 [#allocation6], 4
      %s20 = int_to_ptr.vmem [resolvable:$true] %s19
      %22 = dma.hbm_to_vmem [thread:$0]  %s0, 128, %s20, [#allocation7]
    $region5: #{tpu_custom_call.1} parent=1 // pred_fallthru
      _
    // Predicated region
    $region6: #{tpu_custom_call.1} parent=1 // pred_check
      _
    $region7: #{tpu_custom_call.1} parent=1 // pred_check_branch
      %24 = sbr.rel (0) target = $region9
    $region8: #{tpu_custom_call.1} parent=1 // pred_region
      %s26 = ssub.s32 128, 128
      %27 = vsyncadd [#allocation10], %s26
      %s29 = sshll.u32 [#allocation9], 4
      %s30 = int_to_ptr.vmem [resolvable:$true] %s29
      %32 = dma.hbm_to_vmem [thread:$0]  %s1, 128, %s30, [#allocation10]
    $region9: #{tpu_custom_call.1} parent=1 // pred_fallthru
      _
    // Predicated region
    $region10: #{tpu_custom_call.1} parent=1 // pred_check
      _
    $region11: #{tpu_custom_call.1} parent=1 // pred_check_branch
      %34 = sbr.rel (0) target = $region13
    $region12: #{tpu_custom_call.1} parent=1 // pred_region
      %s36 = ssub.s32 128, 128
      %37 = vsyncadd [#allocation10], %s36
      %s39 = sshll.u32 [#allocation11], 4
      %s40 = int_to_ptr.vmem [resolvable:$true] %s39
      %42 = dma.hbm_to_vmem [thread:$0]  %s2, 128, %s40, [#allocation10]
    $region13: #{tpu_custom_call.1} parent=1 // pred_fallthru
      _
    // Predicated region
    $region14: #{tpu_custom_call.1} parent=1 // pred_check
      _
    $region15: #{tpu_custom_call.1} parent=1 // pred_check_branch
      %44 = sbr.rel (0) target = $region17
    $region16: #{tpu_custom_call.1} parent=1 // pred_region
      %s46 = ssub.s32 128, 128
      %47 = vsyncadd [#allocation13], %s46
      %s49 = sshll.u32 [#allocation12], 4
      %s50 = int_to_ptr.vmem [resolvable:$true] %s49
      %52 = dma.hbm_to_vmem [thread:$0]  %s3, 128, %s50, [#allocation13]
    $region17: #{tpu_custom_call.1} parent=1 // pred_fallthru
      _
    // Predicated region
    $region18: #{tpu_custom_call.1} parent=1 // pred_check
      _
    $region19: #{tpu_custom_call.1} parent=1 // pred_check_branch
      %54 = sbr.rel (0) target = $region21
    $region20: #{tpu_custom_call.1} parent=1 // pred_region
      %55 = dma.done [#allocation7], 128
    $region21: #{tpu_custom_call.1} parent=1 // pred_fallthru
      _
    // Predicated region
    $region22: #{tpu_custom_call.1} parent=1 // pred_check
      _
    $region23: #{tpu_custom_call.1} parent=1 // pred_check_branch
      %57 = sbr.rel (0) target = $region25
    $region24: #{tpu_custom_call.1} parent=1 // pred_region
      %58 = dma.done [#allocation10], 128
    $region25: #{tpu_custom_call.1} parent=1 // pred_fallthru
      _
    // Predicated region
    $region26: #{tpu_custom_call.1} parent=1 // pred_check
      _
    $region27: #{tpu_custom_call.1} parent=1 // pred_check_branch
      %60 = sbr.rel (0) target = $region29
    $region28: #{tpu_custom_call.1} parent=1 // pred_region
      %61 = dma.done [#allocation10], 128
    $region29: #{tpu_custom_call.1} parent=1 // pred_fallthru
      _
    // Predicated region
    $region30: #{tpu_custom_call.1} parent=1 // pred_check
      _
    $region31: #{tpu_custom_call.1} parent=1 // pred_check_branch
      %63 = sbr.rel (0) target = $region33
    $region32: #{tpu_custom_call.1} parent=1 // pred_region
      %64 = dma.done [#allocation13], 128
    $region33: #{tpu_custom_call.1} parent=1 // pred_fallthru
      _
    %p66 = scmp.eq.s32.totalorder 0, 0
    // Predicated region
    $region34: #{tpu_custom_call.1} parent=1 // pred_check
      %p67 = pneg %p66
    $region35: #{tpu_custom_call.1} parent=1 // pred_check_branch
      %69 = sbr.rel (%p67) target = $region37
    $region36: #{tpu_custom_call.1} parent=1 // pred_region
      %v70 = vld [vmem:[#allocation6] sm:$0xff]
      %v71 = vmul.f32 %v70, %v70
      %72 = vadd.xlane.f32.xlu0 %v71
      %v73 = vpop.xlane.xlu0 %72
      %v74 = vmax.f32 %v73, 1e-16
      %v75 = vrsqrt.pop %v74
      %v76 = vmul.f32 %v70, %v75
      %v77 = vld [vmem:[#allocation9] sm:$0xff]
      %v78 = vmul.f32 %v77, %v77
      %79 = vadd.xlane.f32.xlu0 %v78
      %v80 = vpop.xlane.xlu0 %79
      %v81 = vmax.f32 %v80, 1e-16
      %v82 = vrsqrt.pop %v81
      %v83 = vmul.f32 %v77, %v82
      %v84 = vpack.c.bf16 %v83, %v76
      %v86 = vunpack.c.l.b16 %v84
      %v87 = vunpack.c.h.b16 %v84
      %v88 = vpack.c.b16 %v86, %v86
      %v89 = vpack.c.b16 %v87, %v87
      %92 = vst [vmem:[#allocation2] sm:$0xf] %v88
      %93 = vst [vmem:[#allocation2 + $0x4] sm:$0xf] %v89
      %v94 = vmul.f32 %v76, %v83
      %95 = vadd.xlane.f32.xlu0 %v94
      %v96 = vpop.xlane.xlu0 %95
      %v97 = vmul.f32 %v96, 2.0
      %vm98 = vcmask 7168
      %99 = vst.msk [vmem:[#allocation3] sm:$0xff] %vm98, %v97
      %100 = vst.msk [vmem:[#allocation4] sm:$0xff] %vm98, -1e+30
      %101 = vst.msk [vmem:[#allocation4 + $0x8] sm:$0xff] %vm98, -1e+30
      %102 = vst.msk [vmem:[#allocation5] sm:$0xff] %vm98, 0.0
      %103 = vst.msk [vmem:[#allocation5 + $0x8] sm:$0xff] %vm98, 0.0
    $region37: #{tpu_custom_call.1} parent=1 // pred_fallthru
      _
    %v104 = vld [vmem:[#allocation11] sm:$0xff]
    %v105 = vmul.f32 %v104, %v104
    %106 = vadd.xlane.f32.xlu0 %v105
    %v107 = vpop.xlane.xlu0 %106
    %v108 = vmax.f32 %v107, 1e-16
    %v109 = vrsqrt.pop %v108
    %v110 = vmul.f32 %v104, %v109
    %v111 = vpack.c.bf16 %v110, %v110
    %v112 = vld [vmem:[#allocation12] sm:$0xff]
    %v113 = vmul.f32 %v112, %v112
    %114 = vadd.xlane.f32.xlu0 %v113
    %v115 = vpop.xlane.xlu0 %114
    %v116 = vmax.f32 %v115, 1e-16
    %v117 = vrsqrt.pop %v116
    %v118 = vmul.f32 %v112, %v117
    %v119 = vpack.c.bf16 %v118, %v118
    %v120 = vld [vmem:[#allocation2] sm:$0xf]
    %v121 = vld [vmem:[#allocation2 + $0x4] sm:$0xf]
    %v124 = vunpack.c.l.b16 %v120
    %v125 = vunpack.c.l.b16 %v121
    %v126 = vpack.c.b16 %v125, %v124
    %128 = vmatprep.subr.bf16.mxu0 0
    %129 = vmatpush1.bf16.xpose.msra.mxu0 0
    %130 = vmatprep.subr.bf16.mxu0 0
    %131 = vmatpush1.bf16.xpose.msra.mxu0 0
    %132 = vmatprep.subr.bf16.mxu0 0
    %133 = vmatpush1.bf16.xpose.msra.mxu0 0
    %134 = vmatprep.subr.bf16.mxu0 0
    %135 = vmatpush1.bf16.xpose.msra.mxu0 0
    %136 = vmatprep.subr.bf16.mxu0 0
    %137 = vmatpush1.bf16.xpose.msra.mxu0 0
    %138 = vmatprep.subr.bf16.mxu0 0
    %139 = vmatpush1.bf16.xpose.msra.mxu0 0
    %140 = vmatprep.subr.bf16.mxu0 0
    %141 = vmatpush1.bf16.xpose.msra.mxu0 0
    %142 = vmatprep.subr.bf16.mxu0 0
    %143 = vmatpush1.bf16.xpose.msra.mxu0 %v111
    %144 = vmatprep.subr.bf16.mxu0 0
    %145 = vmatpush2.bf16.xpose.msra.mxu0 0
    %146 = vmatprep.subr.bf16.mxu0 0
    %147 = vmatpush2.bf16.xpose.msra.mxu0 0
    %148 = vmatprep.subr.bf16.mxu0 0
    %149 = vmatpush2.bf16.xpose.msra.mxu0 0
    %150 = vmatprep.subr.bf16.mxu0 0
    %151 = vmatpush2.bf16.xpose.msra.mxu0 0
    %152 = vmatprep.subr.bf16.mxu0 0
    %153 = vmatpush2.bf16.xpose.msra.mxu0 0
    %154 = vmatprep.subr.bf16.mxu0 0
    %155 = vmatpush2.bf16.xpose.msra.mxu0 0
    %156 = vmatprep.subr.bf16.mxu0 0
    %157 = vmatpush2.bf16.xpose.msra.mxu0 0
    %158 = vmatprep.subr.bf16.mxu0 0
    %159 = vmatpush2.bf16.xpose.msra.mxu0 0
    %160 = vmatprep.mubr.bf16.mxu0 0
    %161 = vmatmul.mubr.bf16.gmra.mxu0 %v126
    %v162 = vpop.f32.mrf.mxu0
    %v163 = vadd.f32 0.0, %v162
    %v164 = vpop.f32.mrf.mxu0
    %v165 = vpop.f32.mrf.mxu0
    %v166 = vadd.f32 0.0, %v165
    %v167 = vpop.f32.mrf.mxu0
    %168 = vdwg.mxu0
    %v169 = vmul.f32 %v163, 2.0
    %v170 = vmul.f32 %v166, 2.0
    %171 = vmatprep.subr.bf16.mxu0 0
    %172 = vmatpush1.bf16.xpose.msra.mxu0 0
    %173 = vmatprep.subr.bf16.mxu0 0
    %174 = vmatpush1.bf16.xpose.msra.mxu0 0
    %175 = vmatprep.subr.bf16.mxu0 0
    %176 = vmatpush1.bf16.xpose.msra.mxu0 0
    %177 = vmatprep.subr.bf16.mxu0 0
    %178 = vmatpush1.bf16.xpose.msra.mxu0 0
    %179 = vmatprep.subr.bf16.mxu0 0
    %180 = vmatpush1.bf16.xpose.msra.mxu0 0
    %181 = vmatprep.subr.bf16.mxu0 0
    %182 = vmatpush1.bf16.xpose.msra.mxu0 0
    %183 = vmatprep.subr.bf16.mxu0 0
    %184 = vmatpush1.bf16.xpose.msra.mxu0 0
    %185 = vmatprep.subr.bf16.mxu0 0
    %186 = vmatpush1.bf16.xpose.msra.mxu0 %v119
    %187 = vmatprep.subr.bf16.mxu0 0
    %188 = vmatpush2.bf16.xpose.msra.mxu0 0
    %189 = vmatprep.subr.bf16.mxu0 0
    %190 = vmatpush2.bf16.xpose.msra.mxu0 0
    %191 = vmatprep.subr.bf16.mxu0 0
    %192 = vmatpush2.bf16.xpose.msra.mxu0 0
    %193 = vmatprep.subr.bf16.mxu0 0
    %194 = vmatpush2.bf16.xpose.msra.mxu0 0
    %195 = vmatprep.subr.bf16.mxu0 0
    %196 = vmatpush2.bf16.xpose.msra.mxu0 0
    %197 = vmatprep.subr.bf16.mxu0 0
    %198 = vmatpush2.bf16.xpose.msra.mxu0 0
    %199 = vmatprep.subr.bf16.mxu0 0
    %200 = vmatpush2.bf16.xpose.msra.mxu0 0
    %201 = vmatprep.subr.bf16.mxu0 0
    %202 = vmatpush2.bf16.xpose.msra.mxu0 0
    %203 = vmatprep.mubr.bf16.mxu0 0
    %204 = vmatmul.mubr.bf16.gmra.mxu0 %v126
    %v205 = vpop.f32.mrf.mxu0
    %v206 = vadd.f32 0.0, %v205
    %v207 = vpop.f32.mrf.mxu0
    %v208 = vpop.f32.mrf.mxu0
    %v209 = vadd.f32 0.0, %v208
    %v210 = vpop.f32.mrf.mxu0
    %211 = vdwg.mxu0
    %v212 = vmul.f32 %v206, 2.0
    %v213 = vmul.f32 %v209, 2.0
    %v214 = vlaneseq
    %v215 = vshrl.u32 %v214, 7
    %v216 = vadd.s32 %v215, 8
    %v217 = vlaneseq
    %v218 = vand.u32 %v217, 127
    %p219 = scmp.eq.s32.totalorder 0, 0
    %vm220 = vcmp.eq.s32.totalorder %v215, %v218
    %vm221 = vcmp.eq.s32.totalorder %v216, %v218
    %s222 = scalar_select %p219, 1, 0
    %v223 = vstv %s222
    %vm224 = vcmp.eq.s32.totalorder %v223, 1
    %vm225 = vmand %vm220, %vm224
    %vm226 = vmand %vm221, %vm224
    %v227 = vsel %vm225, -1e+30, %v169
    %v228 = vsel %vm226, -1e+30, %v170
    %v229 = vadd.s32 %v218, 8
    %vm230 = vcmp.eq.s32.totalorder %v215, %v229
    %vm231 = vcmp.eq.s32.totalorder %v216, %v229
    %vm232 = vmand %vm230, %vm224
    %vm233 = vmand %vm231, %vm224
    %v234 = vsel %vm232, -1e+30, %v212
    %v235 = vsel %vm233, -1e+30, %v213
    %v236 = vld [vmem:[#allocation4] sm:$0xff]
    %v237 = vld [vmem:[#allocation4 + $0x8] sm:$0xff]
    %vm238 = vcmask 64512
    %v239 = vsel %vm238, %v227, -inf
    %240 = vmax.xlane.f32.xlu0 %v239
    %v241 = vpop.xlane.xlu0 %240
    %v242 = vsel %vm238, %v228, -inf
    %243 = vmax.xlane.f32.xlu0 %v242
    %v244 = vpop.xlane.xlu0 %243
    %v245 = vsel %vm238, %v234, -inf
    %246 = vmax.xlane.f32.xlu0 %v245
    %v247 = vpop.xlane.xlu0 %246
    %v248 = vsel %vm238, %v235, -inf
    %249 = vmax.xlane.f32.xlu0 %v248
    %v250 = vpop.xlane.xlu0 %249
    %v251 = vmax.f32 %v241, %v247
    %v252 = vmax.f32 %v244, %v250
    %v253 = vmax.f32 %v236, %v251
    %v254 = vmax.f32 %v237, %v252
    %v255 = vsub.f32 %v236, %v253
    %v256 = vsub.f32 %v237, %v254
    %v257 = vmul.f32 %v255, 1.442695
    %v258 = vpow.pop %v257
    %v259 = vmul.f32 %v256, 1.442695
    %v260 = vpow.pop %v259
    %262 = vset.pattern.permute.xlu0 0
    %263 = vperm.xlu0 %262, %v253
    %v264 = vpop.permute.xlu0 %263
    %267 = vset.pattern.permute.xlu0 0
    %268 = vperm.xlu0 %267, %v254
    %v269 = vpop.permute.xlu0 %268
    %v271 = vsub.f32 %v227, %v264
    %v272 = vsub.f32 %v228, %v269
    %v273 = vmul.f32 %v271, 1.442695
    %v274 = vpow.pop %v273
    %v275 = vmul.f32 %v272, 1.442695
    %v276 = vpow.pop %v275
    %v277 = vsel %vm238, %v274, 0.0
    %278 = vadd.xlane.f32.xlu0 %v277
    %v279 = vpop.xlane.xlu0 %278
    %v280 = vsel %vm238, %v276, 0.0
    %281 = vadd.xlane.f32.xlu0 %v280
    %v282 = vpop.xlane.xlu0 %281
    %v283 = vsub.f32 %v234, %v264
    %v284 = vsub.f32 %v235, %v269
    %v285 = vmul.f32 %v283, 1.442695
    %v286 = vpow.pop %v285
    %v287 = vmul.f32 %v284, 1.442695
    %v288 = vpow.pop %v287
    %v289 = vsel %vm238, %v286, 0.0
    %290 = vadd.xlane.f32.xlu0 %v289
    %v291 = vpop.xlane.xlu0 %290
    %v292 = vsel %vm238, %v288, 0.0
    %293 = vadd.xlane.f32.xlu0 %v292
    %v294 = vpop.xlane.xlu0 %293
    %v295 = vadd.f32 %v279, %v291
    %v296 = vadd.f32 %v282, %v294
    %v297 = vld [vmem:[#allocation5] sm:$0xff]
    %v298 = vld [vmem:[#allocation5 + $0x8] sm:$0xff]
    %v299 = vmul.f32 %v258, %v297
    %v300 = vmul.f32 %v260, %v298
    %v301 = vadd.f32 %v299, %v295
    %v302 = vadd.f32 %v300, %v296
    %vm303 = vcmask 7168
    %304 = vst.msk [vmem:[#allocation5] sm:$0xff] %vm303, %v301
    %305 = vst.msk [vmem:[#allocation5 + $0x8] sm:$0xff] %vm303, %v302
    %306 = vst.msk [vmem:[#allocation4] sm:$0xff] %vm303, %v253
    %307 = vst.msk [vmem:[#allocation4 + $0x8] sm:$0xff] %vm303, %v254
    // Predicated region
    $region38: #{tpu_custom_call.1} parent=1 // pred_check
      %p308 = pneg %p66
    $region39: #{tpu_custom_call.1} parent=1 // pred_check_branch
      %310 = sbr.rel (%p308) target = $region41
    $region40: #{tpu_custom_call.1} parent=1 // pred_region
      %v311 = vld [vmem:[#allocation4] sm:$0xff]
      %v312 = vld [vmem:[#allocation4 + $0x8] sm:$0xff]
      %v313 = vld [vmem:[#allocation5] sm:$0xff]
      %v314 = vld [vmem:[#allocation5 + $0x8] sm:$0xff]
      %v315 = vlog2.pop %v313
      %v316 = vmul.f32 %v315, 0.6931472
      %v317 = vlog2.pop %v314
      %v318 = vmul.f32 %v317, 0.6931472
      %v319 = vadd.f32 %v311, %v316
      %v320 = vadd.f32 %v312, %v318
      %v321 = vld [vmem:[#allocation3] sm:$0xff]
      %v322 = vsub.f32 %v319, %v321
      %v323 = vsub.f32 %v320, %v321
      %v324 = vadd.f32 %v322, %v323
      %v325 = vsel %vm303, %v324, 0.0
      %326 = vadd.xlane.f32.xlu0 %v325
      %v327 = vpop.xlane.xlu0 %326
      %v328 = vrot.slane %v327, 4
      %v329 = vadd.f32 %v327, %v328
      %v330 = vrot.slane %v329, 2
      %v331 = vadd.f32 %v329, %v330
      %v332 = vrot.slane %v331, 1
      %v333 = vadd.f32 %v331, %v332
      %s334 = vtos %v333
      %v335 = vstv %s334
      %vm336 = vcmask 0
      %337 = vst.msk [vmem:[#allocation14] sm:$0x1] %vm336, %v335
    $region41: #{tpu_custom_call.1} parent=1 // pred_fallthru
      _
    // Predicated region
    $region42: #{tpu_custom_call.1} parent=1 // pred_check
      _
    $region43: #{tpu_custom_call.1} parent=1 // pred_check_branch
      %339 = sbr.rel (0) target = $region45
    $region44: #{tpu_custom_call.1} parent=1 // pred_region
      %s341 = ssub.s32 16, 16
      %342 = vsyncadd [#allocation8], %s341
      %s344 = sshll.u32 [#allocation14], 4
      %s345 = int_to_ptr.vmem [resolvable:$true] %s344
      %347 = dma.vmem_to_hbm [thread:$0]  %s345, 16, %s4, [#allocation8]
    $region45: #{tpu_custom_call.1} parent=1 // pred_fallthru
      _
    // Predicated region
    $region46: #{tpu_custom_call.1} parent=1 // pred_check
      _
    $region47: #{tpu_custom_call.1} parent=1 // pred_check_branch
      %349 = sbr.rel (0) target = $region49
    $region48: #{tpu_custom_call.1} parent=1 // pred_region
      %350 = dma.done [#allocation8], 16
    $region49: #{tpu_custom_call.1} parent=1 // pred_fallthru
      _
    %351 = vsyncpa [#allocation7], 1
    %352 = vsyncpa [#allocation10], 1
    %353 = vsyncpa [#allocation13], 1
    %354 = vsyncpa [#allocation8], 1

</llo_original>
